<compile_context>
chip_gen: v7x
topology: tpu7x:2x2x1
jax: 0.10.0
libtpu: 0.0.40
codegen_flags: <defaults>
</compile_context>

<pallas_src>
import jax
import jax.numpy as jnp
from jax.experimental import pallas as pl
from jax.experimental.pallas import tpu as pltpu


_LANE_CHUNK = 512  # lanes processed per inner step; ~<50 live vregs per slab


def _mlp_kernel(xt_ref, w1_ref, b1_ref, w2_ref, b2_ref, w3_ref, b3_ref, ot_ref):
    # xt_ref: (num_inputs, TB)   -- batch on lanes
    # w*_ref: PyTorch (out, in) layout, VMEM-resident across the whole grid
    # b*_ref: (out, 1), broadcast along the lane (batch) axis
    tb = xt_ref.shape[1]
    nhid = w1_ref.shape[0]
    nout = w3_ref.shape[0]
    chunk = min(_LANE_CHUNK, tb)

    # Load weights and hoist bias broadcasts out of the slab loop.
    w1 = w1_ref[...]
    w2 = w2_ref[...]
    w3 = w3_ref[...]
    b1 = jnp.broadcast_to(b1_ref[...], (nhid, chunk))
    b2 = jnp.broadcast_to(b2_ref[...], (nhid, chunk))
    b3 = jnp.broadcast_to(b3_ref[...], (nout, chunk))

    # Fully unrolled static loop over lane slabs (offsets are compile-time
    # constants -> aligned vector loads/stores, intermediates stay in vregs).
    for off in range(0, tb, chunk):
        cur = min(chunk, tb - off)
        xt = xt_ref[:, off:off + cur]
        h1 = jnp.tanh(
            jnp.dot(w1, xt, preferred_element_type=jnp.float32) + b1[:, :cur]
        )
        h2 = jnp.tanh(
            jnp.dot(w2, h1, preferred_element_type=jnp.float32) + b2[:, :cur]
        )
        yt = jnp.dot(w3, h2, preferred_element_type=jnp.float32) + b3[:, :cur]
        ot_ref[:, off:off + cur] = yt.astype(ot_ref.dtype)


def _round_up(n, m):
    return ((n + m - 1) // m) * m


def _cdiv(n, m):
    return (n + m - 1) // m


def _choose_batch_tile(bp, max_tile):
    """Pick a 128-multiple batch tile <= max_tile; prefer an even tile count."""
    n_groups = bp // 128
    max_groups = max(1, max_tile // 128)
    n_tiles = _cdiv(n_groups, max_groups)
    # v7x megacore: with dimension_semantics=("parallel",) the grid is sharded
    # across both TensorCores, so avoid a 1-step (or odd) grid when possible.
    if n_tiles % 2 == 1 and n_groups > n_tiles:
        n_tiles += 1
    groups_per_tile = _cdiv(n_groups, n_tiles)
    return 128 * groups_per_tile


def net_forward_lane_major(xt, params, *, max_tile=32768):
    """Forward pass in lane-major layout: xt (num_inputs, B) -> y^T (num_outputs, B).

    Use this entry point when the producer/consumer already works in
    (features, batch) layout; it avoids the wrapper transposes entirely.
    B is ideally a multiple of 128 (otherwise the ragged last block is handled
    by Pallas, with out-of-bounds writes dropped).
    """
    w1, b1, w2, b2, w3, b3 = params
    num_inputs, bp = xt.shape
    num_hidden = w1.shape[0]
    num_outputs = w3.shape[0]

    tb = _choose_batch_tile(_round_up(bp, 128), max_tile)
    grid = (_cdiv(bp, tb),)

    # Biases as (out, 1) so they broadcast along the lane (batch) axis.
    b1c = b1.reshape(-1, 1)
    b2c = b2.reshape(-1, 1)
    b3c = b3.reshape(-1, 1)

    resident = lambda shape: pl.BlockSpec(shape, lambda i: (0, 0))

    flops = 2 * bp * (
        num_inputs * num_hidden + num_hidden * num_hidden + num_hidden * num_outputs
    )
    transcendentals = 2 * bp * num_hidden
    bytes_accessed = 4 * (
        bp * (num_inputs + num_outputs)
        + w1.size + w2.size + w3.size + b1.size + b2.size + b3.size
    )

    yt = pl.pallas_call(
        _mlp_kernel,
        out_shape=jax.ShapeDtypeStruct((num_outputs, bp), xt.dtype),
        grid=grid,
        in_specs=[
            pl.BlockSpec((num_inputs, tb), lambda i: (0, i)),  # x^T, batch-tiled
            resident(w1.shape),
            resident(b1c.shape),
            resident(w2.shape),
            resident(b2c.shape),
            resident(w3.shape),
            resident(b3c.shape),
        ],
        out_specs=pl.BlockSpec((num_outputs, tb), lambda i: (0, i)),
        compiler_params=pltpu.CompilerParams(
            dimension_semantics=("parallel",),
        ),
        cost_estimate=pl.CostEstimate(
            flops=flops,
            transcendentals=transcendentals,
            bytes_accessed=bytes_accessed,
        ),
    )(xt, w1, b1c, w2, b2c, w3, b3c)
    return yt  # (num_outputs, bp)


def _reference_forward(x, params):
    """Pure-JAX reference (PyTorch layout: x @ W^T + b)."""
    w1, b1, w2, b2, w3, b3 = params
    h1 = jnp.tanh(x @ w1.T + b1)
    h2 = jnp.tanh(h1 @ w2.T + b2)
    return h2 @ w3.T + b3


def net_forward(x, params, *, max_tile=32768, min_pallas_batch=1024):
    """Equivalent of Net.forward. x: (B, num_inputs) -> (B, num_outputs)."""
    b, num_inputs = x.shape

    # Small-batch fast path: launch/padding overhead dwarfs the work below ~1k
    # rows, so run plain XLA there.  Set min_pallas_batch=0 to force the kernel.
    if b < min_pallas_batch:
        return _reference_forward(x, params)

    # Single relayout pass: transpose x (and pad the batch only up to the next
    # multiple of 128 — never to the tile size; the grid is cdiv-ragged).
    bp = _round_up(b, 128)
    if bp == b:
        xt = x.T
    else:
        xt = jnp.zeros((num_inputs, bp), x.dtype).at[:, :b].set(x.T)

    yt = net_forward_lane_major(xt, params, max_tile=max_tile)

    # Restore the PyTorch-facing (B, num_outputs) layout.  Callers that can
    # consume (num_outputs, B) should use net_forward_lane_major directly.
    return yt[:, :b].T


def init_params(key, num_inputs, num_outputs, num_hidden=10):
    """Matches Net.random_initialize: weights ~ U(-1, 1), biases ~ U(0, 1)."""
    ks = jax.random.split(key, 6)
    w1 = jax.random.uniform(ks[0], (num_hidden, num_inputs), jnp.float32, -1.0, 1.0)
    b1 = jax.random.uniform(ks[1], (num_hidden,), jnp.float32, 0.0, 1.0)
    w2 = jax.random.uniform(ks[2], (num_hidden, num_hidden), jnp.float32, -1.0, 1.0)
    b2 = jax.random.uniform(ks[3], (num_hidden,), jnp.float32, 0.0, 1.0)
    w3 = jax.random.uniform(ks[4], (num_outputs, num_hidden), jnp.float32, -1.0, 1.0)
    b3 = jax.random.uniform(ks[5], (num_outputs,), jnp.float32, 0.0, 1.0)
    return (w1, b1, w2, b2, w3, b3)


if __name__ == "__main__":
    # TODO(synk): Net.train (Adam + MSELoss training loop) not implemented; forward only.
    key = jax.random.PRNGKey(0)
    num_inputs, num_outputs, num_hidden = 4, 3, 10
    batch = 8

    pkey, xkey = jax.random.split(key)
    params = init_params(pkey, num_inputs, num_outputs, num_hidden)
    x = jax.random.normal(xkey, (batch, num_inputs), jnp.float32)

    # Force the Pallas path even at this tiny demo batch so the kernel runs.
    y = net_forward(x, params, min_pallas_batch=0)
    jax.block_until_ready(y)

    # Check against the pure-JAX reference and the default (fast-path) route.
    y_ref = _reference_forward(x, params)
    assert y.shape == (batch, num_outputs)
    assert jnp.allclose(y, y_ref, atol=1e-5, rtol=1e-5)

    y_auto = net_forward(x, params)  # small-batch fast path
    assert jnp.allclose(y_auto, y_ref, atol=1e-6, rtol=1e-6)

    print("KERNEL_OK")
</pallas_src>

<mosaic_0001>
module attributes {stable_mosaic.version = 11 : i64} {
  func.func @_mlp_kernel(%arg0: i32, %arg1: memref<4x128xf32, #tpu.memory_space<vmem>>, %arg2: memref<10x4xf32, #tpu.memory_space<vmem>>, %arg3: memref<10x1xf32, #tpu.memory_space<vmem>>, %arg4: memref<10x10xf32, #tpu.memory_space<vmem>>, %arg5: memref<10x1xf32, #tpu.memory_space<vmem>>, %arg6: memref<3x10xf32, #tpu.memory_space<vmem>>, %arg7: memref<3x1xf32, #tpu.memory_space<vmem>>, %arg8: memref<3x128xf32, #tpu.memory_space<vmem>>) attributes {dimension_semantics = [#tpu.dimension_semantics<parallel>], iteration_bounds = array<i64: 1>, scalar_prefetch = 0 : i64, scratch_operands = 0 : i64, tpu.core_type = #tpu.core_type<tc>, window_params = [{transform_indices = @transform_0, window_bounds = array<i64: 4, 128>}, {pipeline_mode = #tpu.pipeline_mode<synchronous>, transform_indices = @transform_1, window_bounds = array<i64: 10, 4>}, {pipeline_mode = #tpu.pipeline_mode<synchronous>, transform_indices = @transform_2, window_bounds = array<i64: 10, 1>}, {pipeline_mode = #tpu.pipeline_mode<synchronous>, transform_indices = @transform_3, window_bounds = array<i64: 10, 10>}, {pipeline_mode = #tpu.pipeline_mode<synchronous>, transform_indices = @transform_4, window_bounds = array<i64: 10, 1>}, {pipeline_mode = #tpu.pipeline_mode<synchronous>, transform_indices = @transform_5, window_bounds = array<i64: 3, 10>}, {pipeline_mode = #tpu.pipeline_mode<synchronous>, transform_indices = @transform_6, window_bounds = array<i64: 3, 1>}, {transform_indices = @transform_7, window_bounds = array<i64: 3, 128>}]} {
    %c0 = arith.constant 0 : index
    %c0_0 = arith.constant 0 : index
    %0 = vector.load %arg2[%c0, %c0_0] : memref<10x4xf32, #tpu.memory_space<vmem>>, vector<10x4xf32>
    %c0_1 = arith.constant 0 : index
    %c0_2 = arith.constant 0 : index
    %1 = vector.load %arg4[%c0_1, %c0_2] : memref<10x10xf32, #tpu.memory_space<vmem>>, vector<10x10xf32>
    %c0_3 = arith.constant 0 : index
    %c0_4 = arith.constant 0 : index
    %2 = vector.load %arg6[%c0_3, %c0_4] : memref<3x10xf32, #tpu.memory_space<vmem>>, vector<3x10xf32>
    %c0_5 = arith.constant 0 : index
    %c0_6 = arith.constant 0 : index
    %3 = vector.load %arg3[%c0_5, %c0_6] : memref<10x1xf32, #tpu.memory_space<vmem>>, vector<10x1xf32>
    %4 = vector.shape_cast %3 : vector<10x1xf32> to vector<10x1xf32>
    %5 = vector.broadcast %4 : vector<10x1xf32> to vector<10x128xf32>
    %c0_7 = arith.constant 0 : index
    %c0_8 = arith.constant 0 : index
    %6 = vector.load %arg5[%c0_7, %c0_8] : memref<10x1xf32, #tpu.memory_space<vmem>>, vector<10x1xf32>
    %7 = vector.shape_cast %6 : vector<10x1xf32> to vector<10x1xf32>
    %8 = vector.broadcast %7 : vector<10x1xf32> to vector<10x128xf32>
    %c0_9 = arith.constant 0 : index
    %c0_10 = arith.constant 0 : index
    %9 = vector.load %arg7[%c0_9, %c0_10] : memref<3x1xf32, #tpu.memory_space<vmem>>, vector<3x1xf32>
    %10 = vector.shape_cast %9 : vector<3x1xf32> to vector<3x1xf32>
    %11 = vector.broadcast %10 : vector<3x1xf32> to vector<3x128xf32>
    %c0_11 = arith.constant 0 : index
    %c0_12 = arith.constant 0 : index
    %12 = vector.load %arg1[%c0_11, %c0_12] : memref<4x128xf32, #tpu.memory_space<vmem>>, vector<4x128xf32>
    %cst = arith.constant dense<0.000000e+00> : vector<10x128xf32>
    %13 = tpu.matmul %0, %12, %cst {dimension_numbers = #tpu.dot_dimension_numbers<[1], [0], [0], [1], [0, 0, 1, 1], [], []>} : vector<10x4xf32>, vector<4x128xf32>, vector<10x128xf32> -> vector<10x128xf32>
    %14 = arith.addf %13, %5 : vector<10x128xf32>
    %15 = math.tanh %14 : vector<10x128xf32>
    %cst_13 = arith.constant dense<0.000000e+00> : vector<10x128xf32>
    %16 = tpu.matmul %1, %15, %cst_13 {dimension_numbers = #tpu.dot_dimension_numbers<[1], [0], [0], [1], [0, 0, 1, 1], [], []>} : vector<10x10xf32>, vector<10x128xf32>, vector<10x128xf32> -> vector<10x128xf32>
    %17 = arith.addf %16, %8 : vector<10x128xf32>
    %18 = math.tanh %17 : vector<10x128xf32>
    %cst_14 = arith.constant dense<0.000000e+00> : vector<3x128xf32>
    %19 = tpu.matmul %2, %18, %cst_14 {dimension_numbers = #tpu.dot_dimension_numbers<[1], [0], [0], [1], [0, 0, 1, 1], [], []>} : vector<3x10xf32>, vector<10x128xf32>, vector<3x128xf32> -> vector<3x128xf32>
    %20 = arith.addf %19, %11 : vector<3x128xf32>
    %c0_15 = arith.constant 0 : index
    %c0_16 = arith.constant 0 : index
    %21 = vector.load %arg8[%c0_15, %c0_16] : memref<3x128xf32, #tpu.memory_space<vmem>>, vector<3x128xf32>
    tpu.vector_store %arg8[%c0_15, %c0_16], %20 {strides = array<i32>} : memref<3x128xf32, #tpu.memory_space<vmem>>, vector<3x128xf32>,
    return
  }
  func.func @transform_0(%arg0: i32) -> (i32, i32) {
    %c0_i32 = arith.constant 0 : i32
    %c0_i32_0 = arith.constant 0 : i32
    return %c0_i32, %arg0 : i32, i32
  }
  func.func @transform_1(%arg0: i32) -> (i32, i32) {
    %c0_i32 = arith.constant 0 : i32
    %c0_i32_0 = arith.constant 0 : i32
    %c0_i32_1 = arith.constant 0 : i32
    return %c0_i32, %c0_i32_0 : i32, i32
  }
  func.func @transform_2(%arg0: i32) -> (i32, i32) {
    %c0_i32 = arith.constant 0 : i32
    %c0_i32_0 = arith.constant 0 : i32
    %c0_i32_1 = arith.constant 0 : i32
    return %c0_i32, %c0_i32_0 : i32, i32
  }
  func.func @transform_3(%arg0: i32) -> (i32, i32) {
    %c0_i32 = arith.constant 0 : i32
    %c0_i32_0 = arith.constant 0 : i32
    %c0_i32_1 = arith.constant 0 : i32
    return %c0_i32, %c0_i32_0 : i32, i32
  }
  func.func @transform_4(%arg0: i32) -> (i32, i32) {
    %c0_i32 = arith.constant 0 : i32
    %c0_i32_0 = arith.constant 0 : i32
    %c0_i32_1 = arith.constant 0 : i32
    return %c0_i32, %c0_i32_0 : i32, i32
  }
  func.func @transform_5(%arg0: i32) -> (i32, i32) {
    %c0_i32 = arith.constant 0 : i32
    %c0_i32_0 = arith.constant 0 : i32
    %c0_i32_1 = arith.constant 0 : i32
    return %c0_i32, %c0_i32_0 : i32, i32
  }
  func.func @transform_6(%arg0: i32) -> (i32, i32) {
    %c0_i32 = arith.constant 0 : i32
    %c0_i32_0 = arith.constant 0 : i32
    %c0_i32_1 = arith.constant 0 : i32
    return %c0_i32, %c0_i32_0 : i32, i32
  }
  func.func @transform_7(%arg0: i32) -> (i32, i32) {
    %c0_i32 = arith.constant 0 : i32
    %c0_i32_0 = arith.constant 0 : i32
    return %c0_i32, %arg0 : i32, i32
  }
}

</mosaic_0001>

<llo_original>
// kernel: tpu_custom_call.1
$region0: #{tpu_custom_call.1}
  #allocation0 [shape = 'u32[]', space=smem, size = 0x4, offset = 0x4, fixed_abs, tag = 'smem constant byte address 0x4 - core index']
  #allocation1 [shape = 'u32[144,128]{1,0:T(1,128)}', space=vmem, size = 0x12000, scoped, tag = 'internal scratch']
  %s0 = inlined_call_operand.vmem [shape: f32[4,128], index: 0, kind: input, shape index: {}]
  %s1 = inlined_call_operand.vmem [shape: f32[10,4], index: 1, kind: input, shape index: {}]
  %s2 = inlined_call_operand.vmem [shape: f32[10,1], index: 2, kind: input, shape index: {}]
  %s3 = inlined_call_operand.vmem [shape: f32[10,10], index: 3, kind: input, shape index: {}]
  %s4 = inlined_call_operand.vmem [shape: f32[10,1], index: 4, kind: input, shape index: {}]
  %s5 = inlined_call_operand.vmem [shape: f32[3,10], index: 5, kind: input, shape index: {}]
  %s6 = inlined_call_operand.vmem [shape: f32[3,1], index: 6, kind: input, shape index: {}]
  %s7 = inlined_call_operand.hbm [shape: f32[3,128], index: 7, kind: output, shape index: {}]
  %s8 = sld [smem:[#allocation0]]
  $region38: #{tpu_custom_call.1} parent=0
    _
  %s10 = ssub.s32 1, %s8
  %s11 = scalar_select 0, %s10, %s8
  $region1: #{tpu_custom_call.1} parent=0
    #allocation2 [shape = 'u8[2048]{0}', space=vmem, size = 0x800, scoped, tag = 'output window, operand 0, single buffered']
    #allocation3 [shape = 's32[1]{0}', space=sflag, size = 0x4, scoped, tag = 'scoped memory for tpu_custom_call.1']
    %12 = vsyncpa [#allocation3], 0
    // Predicated region
    $region2: #{tpu_custom_call.1} parent=1 // pred_check
      _
    $region3: #{tpu_custom_call.1} parent=1 // pred_check_branch
      %14 = sbr.rel (0) target = $region5
    $region4: #{tpu_custom_call.1} parent=1 // pred_region
      _
    $region5: #{tpu_custom_call.1} parent=1 // pred_fallthru
      _
    // Predicated region
    $region6: #{tpu_custom_call.1} parent=1 // pred_check
      _
    $region7: #{tpu_custom_call.1} parent=1 // pred_check_branch
      %16 = sbr.rel (0) target = $region9
    $region8: #{tpu_custom_call.1} parent=1 // pred_region
      _
    $region9: #{tpu_custom_call.1} parent=1 // pred_fallthru
      _
    // Predicated region
    $region10: #{tpu_custom_call.1} parent=1 // pred_check
      _
    $region11: #{tpu_custom_call.1} parent=1 // pred_check_branch
      %18 = sbr.rel (0) target = $region13
    $region12: #{tpu_custom_call.1} parent=1 // pred_region
      _
    $region13: #{tpu_custom_call.1} parent=1 // pred_fallthru
      _
    // Predicated region
    $region14: #{tpu_custom_call.1} parent=1 // pred_check
      _
    $region15: #{tpu_custom_call.1} parent=1 // pred_check_branch
      %20 = sbr.rel (0) target = $region17
    $region16: #{tpu_custom_call.1} parent=1 // pred_region
      _
    $region17: #{tpu_custom_call.1} parent=1 // pred_fallthru
      _
    // Predicated region
    $region18: #{tpu_custom_call.1} parent=1 // pred_check
      _
    $region19: #{tpu_custom_call.1} parent=1 // pred_check_branch
      %22 = sbr.rel (0) target = $region21
    $region20: #{tpu_custom_call.1} parent=1 // pred_region
      _
    $region21: #{tpu_custom_call.1} parent=1 // pred_fallthru
      _
    // Predicated region
    $region22: #{tpu_custom_call.1} parent=1 // pred_check
      _
    $region23: #{tpu_custom_call.1} parent=1 // pred_check_branch
      %24 = sbr.rel (0) target = $region25
    $region24: #{tpu_custom_call.1} parent=1 // pred_region
      _
    $region25: #{tpu_custom_call.1} parent=1 // pred_fallthru
      _
    // Predicated region
    $region26: #{tpu_custom_call.1} parent=1 // pred_check
      _
    $region27: #{tpu_custom_call.1} parent=1 // pred_check_branch
      %26 = sbr.rel (0) target = $region29
    $region28: #{tpu_custom_call.1} parent=1 // pred_region
      _
    $region29: #{tpu_custom_call.1} parent=1 // pred_fallthru
      _
    %v27 = vld [vmem:[%s1] sm:$0xff]
    %v28 = vld [vmem:[%s1 + $0x8] sm:$0x3]
    %v29 = vld [vmem:[%s3] sm:$0xff]
    %v30 = vld [vmem:[%s3 + $0x8] sm:$0x3]
    %v31 = vld [vmem:[%s5] sm:$0x7]
    %v32 = vld [vmem:[%s2] sm:$0xff]
    %v33 = vld [vmem:[%s2 + $0x8] sm:$0x3]
    %35 = vset.pattern.permute.xlu0 0
    %36 = vperm.xlu0 %35, %v32
    %v37 = vpop.permute.xlu0 %36
    %40 = vset.pattern.permute.xlu0 0
    %41 = vperm.xlu0 %40, %v33
    %v42 = vpop.permute.xlu0 %41
    %v44 = vld [vmem:[%s4] sm:$0xff]
    %v45 = vld [vmem:[%s4 + $0x8] sm:$0x3]
    %47 = vset.pattern.permute.xlu0 0
    %48 = vperm.xlu0 %47, %v44
    %v49 = vpop.permute.xlu0 %48
    %52 = vset.pattern.permute.xlu0 0
    %53 = vperm.xlu0 %52, %v45
    %v54 = vpop.permute.xlu0 %53
    %v56 = vld [vmem:[%s6] sm:$0x7]
    %58 = vset.pattern.permute.xlu0 0
    %59 = vperm.xlu0 %58, %v56
    %v60 = vpop.permute.xlu0 %59
    %v62 = vld [vmem:[%s0] sm:$0xf]
    %vm63 = vcmask 31744
    %v65 = vsel %vm63, %v27, 0
    %v68 = vsel %vm63, %v28, 0
    %vm70 = vcmask 1043456
    %v72 = vsel %vm70, %v62, 0
    %74 = vmatprep.subr.mxu0 0.0
    %75 = vmatpush1.msra.mxu0 %v72
    %76 = vmatprep.subr.mxu0 0.0
    %77 = vmatpush1.msra.mxu0 0.0
    %78 = vmatprep.subr.mxu0 0.0
    %79 = vmatpush1.msra.mxu0 0.0
    %80 = vmatprep.subr.mxu0 0.0
    %81 = vmatpush1.msra.mxu0 0.0
    %82 = vmatprep.subr.mxu0 0.0
    %83 = vmatpush1.msra.mxu0 0.0
    %84 = vmatprep.subr.mxu0 0.0
    %85 = vmatpush1.msra.mxu0 0.0
    %86 = vmatprep.subr.mxu0 0.0
    %87 = vmatpush1.msra.mxu0 0.0
    %88 = vmatprep.subr.mxu0 0.0
    %89 = vmatpush1.msra.mxu0 0.0
    %90 = vmatprep.subr.mxu0 0.0
    %91 = vmatpush1.msra.mxu0 0.0
    %92 = vmatprep.subr.mxu0 0.0
    %93 = vmatpush1.msra.mxu0 0.0
    %94 = vmatprep.subr.mxu0 0.0
    %95 = vmatpush1.msra.mxu0 0.0
    %96 = vmatprep.subr.mxu0 0.0
    %97 = vmatpush1.msra.mxu0 0.0
    %98 = vmatprep.subr.mxu0 0.0
    %99 = vmatpush1.msra.mxu0 0.0
    %100 = vmatprep.subr.mxu0 0.0
    %101 = vmatpush1.msra.mxu0 0.0
    %102 = vmatprep.subr.mxu0 0.0
    %103 = vmatpush1.msra.mxu0 0.0
    %104 = vmatprep.subr.mxu0 0.0
    %105 = vmatpush1.msra.mxu0 0.0
    %106 = vmatprep.subr.mxu0 0.0
    %107 = vmatpush1.msra.mxu0 0.0
    %108 = vmatprep.subr.mxu0 0.0
    %109 = vmatpush1.msra.mxu0 0.0
    %110 = vmatprep.subr.mxu0 0.0
    %111 = vmatpush1.msra.mxu0 0.0
    %112 = vmatprep.subr.mxu0 0.0
    %113 = vmatpush1.msra.mxu0 0.0
    %114 = vmatprep.subr.mxu0 0.0
    %115 = vmatpush1.msra.mxu0 0.0
    %116 = vmatprep.subr.mxu0 0.0
    %117 = vmatpush1.msra.mxu0 0.0
    %118 = vmatprep.subr.mxu0 0.0
    %119 = vmatpush1.msra.mxu0 0.0
    %120 = vmatprep.subr.mxu0 0.0
    %121 = vmatpush1.msra.mxu0 0.0
    %122 = vmatprep.subr.mxu0 0.0
    %123 = vmatpush1.msra.mxu0 0.0
    %124 = vmatprep.subr.mxu0 0.0
    %125 = vmatpush1.msra.mxu0 0.0
    %126 = vmatprep.subr.mxu0 0.0
    %127 = vmatpush1.msra.mxu0 0.0
    %128 = vmatprep.subr.mxu0 0.0
    %129 = vmatpush1.msra.mxu0 0.0
    %130 = vmatprep.subr.mxu0 0.0
    %131 = vmatpush1.msra.mxu0 0.0
    %132 = vmatprep.subr.mxu0 0.0
    %133 = vmatpush1.msra.mxu0 0.0
    %134 = vmatprep.subr.mxu0 0.0
    %135 = vmatpush1.msra.mxu0 0.0
    %136 = vmatprep.subr.mxu0 0.0
    %137 = vmatpush1.msra.mxu0 0.0
    %138 = vmatprep.mubr.f32.mxu0 0.0
    %139 = vmatmul.mubr.f32.gmra.mrb[0].mxu0 %v65
    %v140 = vpop.f32.mrb[0].mxu0
    %v141 = vadd.f32 %v37, %v140
    %v142 = vpop.f32.mrb[0].mxu0
    %143 = vmatprep.mubr.f32.mxu0 0.0
    %144 = vmatmul.mubr.f32.gmra.mrb[0].mxu0 %v68
    %v145 = vpop.f32.mrb[0].mxu0
    %v146 = vadd.f32 %v42, %v145
    %v147 = vpop.f32.mrb[0].mxu0
    %148 = vdwg.mxu0
    %v149 = vtanh.pop %v141
    %v150 = vtanh.pop %v146
    %vm151 = vcmask 80896
    %v153 = vsel %vm151, %v29, 0
    %v156 = vsel %vm151, %v30, 0
    %vm158 = vcmask 1041408
    %v160 = vsel %vm158, %v150, 0
    %162 = vmatprep.subr.mxu0 0.0
    %163 = vmatpush1.msra.mxu0 %v149
    %164 = vmatprep.subr.mxu0 0.0
    %165 = vmatpush1.msra.mxu0 %v160
    %166 = vmatprep.subr.mxu0 0.0
    %167 = vmatpush1.msra.mxu0 0.0
    %168 = vmatprep.subr.mxu0 0.0
    %169 = vmatpush1.msra.mxu0 0.0
    %170 = vmatprep.subr.mxu0 0.0
    %171 = vmatpush1.msra.mxu0 0.0
    %172 = vmatprep.subr.mxu0 0.0
    %173 = vmatpush1.msra.mxu0 0.0
    %174 = vmatprep.subr.mxu0 0.0
    %175 = vmatpush1.msra.mxu0 0.0
    %176 = vmatprep.subr.mxu0 0.0
    %177 = vmatpush1.msra.mxu0 0.0
    %178 = vmatprep.subr.mxu0 0.0
    %179 = vmatpush1.msra.mxu0 0.0
    %180 = vmatprep.subr.mxu0 0.0
    %181 = vmatpush1.msra.mxu0 0.0
    %182 = vmatprep.subr.mxu0 0.0
    %183 = vmatpush1.msra.mxu0 0.0
    %184 = vmatprep.subr.mxu0 0.0
    %185 = vmatpush1.msra.mxu0 0.0
    %186 = vmatprep.subr.mxu0 0.0
    %187 = vmatpush1.msra.mxu0 0.0
    %188 = vmatprep.subr.mxu0 0.0
    %189 = vmatpush1.msra.mxu0 0.0
    %190 = vmatprep.subr.mxu0 0.0
    %191 = vmatpush1.msra.mxu0 0.0
    %192 = vmatprep.subr.mxu0 0.0
    %193 = vmatpush1.msra.mxu0 0.0
    %194 = vmatprep.subr.mxu0 0.0
    %195 = vmatpush1.msra.mxu0 0.0
    %196 = vmatprep.subr.mxu0 0.0
    %197 = vmatpush1.msra.mxu0 0.0
    %198 = vmatprep.subr.mxu0 0.0
    %199 = vmatpush1.msra.mxu0 0.0
    %200 = vmatprep.subr.mxu0 0.0
    %201 = vmatpush1.msra.mxu0 0.0
    %202 = vmatprep.subr.mxu0 0.0
    %203 = vmatpush1.msra.mxu0 0.0
    %204 = vmatprep.subr.mxu0 0.0
    %205 = vmatpush1.msra.mxu0 0.0
    %206 = vmatprep.subr.mxu0 0.0
    %207 = vmatpush1.msra.mxu0 0.0
    %208 = vmatprep.subr.mxu0 0.0
    %209 = vmatpush1.msra.mxu0 0.0
    %210 = vmatprep.subr.mxu0 0.0
    %211 = vmatpush1.msra.mxu0 0.0
    %212 = vmatprep.subr.mxu0 0.0
    %213 = vmatpush1.msra.mxu0 0.0
    %214 = vmatprep.subr.mxu0 0.0
    %215 = vmatpush1.msra.mxu0 0.0
    %216 = vmatprep.subr.mxu0 0.0
    %217 = vmatpush1.msra.mxu0 0.0
    %218 = vmatprep.subr.mxu0 0.0
    %219 = vmatpush1.msra.mxu0 0.0
    %220 = vmatprep.subr.mxu0 0.0
    %221 = vmatpush1.msra.mxu0 0.0
    %222 = vmatprep.subr.mxu0 0.0
    %223 = vmatpush1.msra.mxu0 0.0
    %224 = vmatprep.subr.mxu0 0.0
    %225 = vmatpush1.msra.mxu0 0.0
    %226 = vmatprep.mubr.f32.mxu0 0.0
    %227 = vmatmul.mubr.f32.gmra.mrb[0].mxu0 %v153
    %v228 = vpop.f32.mrb[0].mxu0
    %v229 = vadd.f32 %v49, %v228
    %v230 = vpop.f32.mrb[0].mxu0
    %231 = vmatprep.mubr.f32.mxu0 0.0
    %232 = vmatmul.mubr.f32.gmra.mrb[0].mxu0 %v156
    %v233 = vpop.f32.mrb[0].mxu0
    %v234 = vadd.f32 %v54, %v233
    %v235 = vpop.f32.mrb[0].mxu0
    %236 = vdwg.mxu0
    %v237 = vtanh.pop %v229
    %v238 = vtanh.pop %v234
    %v240 = vsel %vm151, %v31, 0
    %v243 = vsel %vm158, %v238, 0
    %245 = vmatprep.subr.mxu0 0.0
    %246 = vmatpush1.msra.mxu0 %v237
    %247 = vmatprep.subr.mxu0 0.0
    %248 = vmatpush1.msra.mxu0 %v243
    %249 = vmatprep.subr.mxu0 0.0
    %250 = vmatpush1.msra.mxu0 0.0
    %251 = vmatprep.subr.mxu0 0.0
    %252 = vmatpush1.msra.mxu0 0.0
    %253 = vmatprep.subr.mxu0 0.0
    %254 = vmatpush1.msra.mxu0 0.0
    %255 = vmatprep.subr.mxu0 0.0
    %256 = vmatpush1.msra.mxu0 0.0
    %257 = vmatprep.subr.mxu0 0.0
    %258 = vmatpush1.msra.mxu0 0.0
    %259 = vmatprep.subr.mxu0 0.0
    %260 = vmatpush1.msra.mxu0 0.0
    %261 = vmatprep.subr.mxu0 0.0
    %262 = vmatpush1.msra.mxu0 0.0
    %263 = vmatprep.subr.mxu0 0.0
    %264 = vmatpush1.msra.mxu0 0.0
    %265 = vmatprep.subr.mxu0 0.0
    %266 = vmatpush1.msra.mxu0 0.0
    %267 = vmatprep.subr.mxu0 0.0
    %268 = vmatpush1.msra.mxu0 0.0
    %269 = vmatprep.subr.mxu0 0.0
    %270 = vmatpush1.msra.mxu0 0.0
    %271 = vmatprep.subr.mxu0 0.0
    %272 = vmatpush1.msra.mxu0 0.0
    %273 = vmatprep.subr.mxu0 0.0
    %274 = vmatpush1.msra.mxu0 0.0
    %275 = vmatprep.subr.mxu0 0.0
    %276 = vmatpush1.msra.mxu0 0.0
    %277 = vmatprep.subr.mxu0 0.0
    %278 = vmatpush1.msra.mxu0 0.0
    %279 = vmatprep.subr.mxu0 0.0
    %280 = vmatpush1.msra.mxu0 0.0
    %281 = vmatprep.subr.mxu0 0.0
    %282 = vmatpush1.msra.mxu0 0.0
    %283 = vmatprep.subr.mxu0 0.0
    %284 = vmatpush1.msra.mxu0 0.0
    %285 = vmatprep.subr.mxu0 0.0
    %286 = vmatpush1.msra.mxu0 0.0
    %287 = vmatprep.subr.mxu0 0.0
    %288 = vmatpush1.msra.mxu0 0.0
    %289 = vmatprep.subr.mxu0 0.0
    %290 = vmatpush1.msra.mxu0 0.0
    %291 = vmatprep.subr.mxu0 0.0
    %292 = vmatpush1.msra.mxu0 0.0
    %293 = vmatprep.subr.mxu0 0.0
    %294 = vmatpush1.msra.mxu0 0.0
    %295 = vmatprep.subr.mxu0 0.0
    %296 = vmatpush1.msra.mxu0 0.0
    %297 = vmatprep.subr.mxu0 0.0
    %298 = vmatpush1.msra.mxu0 0.0
    %299 = vmatprep.subr.mxu0 0.0
    %300 = vmatpush1.msra.mxu0 0.0
    %301 = vmatprep.subr.mxu0 0.0
    %302 = vmatpush1.msra.mxu0 0.0
    %303 = vmatprep.subr.mxu0 0.0
    %304 = vmatpush1.msra.mxu0 0.0
    %305 = vmatprep.subr.mxu0 0.0
    %306 = vmatpush1.msra.mxu0 0.0
    %307 = vmatprep.subr.mxu0 0.0
    %308 = vmatpush1.msra.mxu0 0.0
    %309 = vmatprep.mubr.f32.mxu0 0.0
    %310 = vmatmul.mubr.f32.gmra.mrb[0].mxu0 %v240
    %v311 = vpop.f32.mrb[0].mxu0
    %v312 = vadd.f32 %v60, %v311
    %v313 = vpop.f32.mrb[0].mxu0
    %314 = vdwg.mxu0
    %315 = vst [vmem:[#allocation2] sm:$0x7] %v312
    // Predicated region
    $region30: #{tpu_custom_call.1} parent=1 // pred_check
      _
    $region31: #{tpu_custom_call.1} parent=1 // pred_check_branch
      %317 = sbr.rel (0) target = $region33
    $region32: #{tpu_custom_call.1} parent=1 // pred_region
      %s319 = ssub.s32 64, 64
      %320 = vsyncadd [#allocation3], %s319
      %s322 = sshll.u32 [#allocation2], 4
      %s323 = int_to_ptr.vmem [resolvable:$true] %s322
      %325 = dma.vmem_to_hbm [thread:$0]  %s323, 64, %s7, [#allocation3]
    $region33: #{tpu_custom_call.1} parent=1 // pred_fallthru
      _
    // Predicated region
    $region34: #{tpu_custom_call.1} parent=1 // pred_check
      _
    $region35: #{tpu_custom_call.1} parent=1 // pred_check_branch
      %327 = sbr.rel (0) target = $region37
    $region36: #{tpu_custom_call.1} parent=1 // pred_region
      %328 = dma.done [#allocation3], 64
    $region37: #{tpu_custom_call.1} parent=1 // pred_fallthru
      _
    %329 = vsyncpa [#allocation3], 1

</llo_original>
